<compile_context>
chip_gen: v5e
topology: v5e:2x2
jax: 0.10.0
libtpu: 0.0.40
codegen_flags: <defaults>
</compile_context>

<pallas_src>
import numpy as np

import jax
import jax.numpy as jnp
from jax.experimental import pallas as pl
from jax.experimental.pallas import tpu as pltpu


def _round_up(n, m):
    return -(-n // m) * m


_SUBLANE = {4: 8, 2: 16}          # rows per packed sublane tile, by itemsize
_PALLAS_DTYPES = (jnp.dtype(jnp.float32), jnp.dtype(jnp.bfloat16))
_MAX_MATMUL_D = 2048              # beyond this the 0/1-matmul trick is MXU-bound


def _padded_cols(D):
    # Lane-dense output: pad the feature dim to a multiple of 128.  Do NOT pad
    # further (e.g. to 256 "for the MXU") -- the kernel is HBM-bound and wider
    # tiles only add traffic.
    return _round_up(D, 128)


def _vmem_budget():
    """Per-TensorCore VMEM capacity minus headroom for compiler scratch."""
    cap = 64 << 20                      # conservative default (v7x per-TC VMEM)
    try:
        cap = int(pltpu.get_tpu_info().vmem_capacity_bytes)
    except Exception:                   # info query unavailable -> stay conservative
        pass
    return max(cap - (16 << 20), 16 << 20)


def _use_pallas_path(D, dtype, budget):
    if jnp.dtype(dtype) not in _PALLAS_DTYPES:
        return False                    # no integer/f64 MXU path (v7x is fp8-only)
    itemsize = jnp.dtype(dtype).itemsize
    Dn = _padded_cols(D)
    if D > _MAX_MATMUL_D or 2 * D * Dn * itemsize > budget // 2:
        return False                    # resident P too big / compute-bound regime
    return True


def _pick_batch_tile(B, D, Dn, itemsize, budget):
    """Sublane-aligned batch tile: big enough for DMA/compute overlap, >= 2 grid
    steps for medium batches (so both v7x TensorCores get work), and small
    enough that 2 in + 2 out + 2 weight buffers fit the VMEM budget."""
    sub = _SUBLANE.get(itemsize, 8)
    b_ceil = _round_up(B, sub)
    per_row = 2 * (D + Dn) * itemsize              # double-buffered in + out rows
    avail = budget - 2 * D * Dn * itemsize         # minus double-buffered weight
    tb_cap = max(sub, (avail // per_row) // sub * sub)
    if b_ceil < 2 * sub:
        tb = b_ceil                                # too small to split
    else:
        pref = 1024 if budget >= (80 << 20) else 512   # bigger tiles on 128 MiB parts
        n_tiles = max(2, pl.cdiv(b_ceil, pref))
        tb = _round_up(pl.cdiv(b_ceil, n_tiles), sub)
    return max(sub, min(tb, tb_cap, b_ceil))


# ----------------------------------------------------------------------------
# Pallas kernel: y_tile = x_tile @ P   (P is a 0/1 permutation matrix)
# ----------------------------------------------------------------------------
def _perm_mm_kernel(x_ref, p_ref, o_ref):
    # precision=HIGHEST keeps f32 activations exact on the MXU (each output
    # column has exactly one nonzero 0/1 weight, so the gather is reproduced).
    o_ref[...] = jnp.dot(
        x_ref[...],
        p_ref[...],
        preferred_element_type=jnp.float32,
        precision=jax.lax.Precision.HIGHEST,
    ).astype(o_ref.dtype)


def _build_perm_matrix(perm, D, Dn, dtype):
    # Host-side numpy build; 0/1 entries are exact in any float dtype.
    P = np.zeros((D, Dn), dtype=np.float32)
    P[np.asarray(perm), np.arange(D)] = 1.0
    return jnp.asarray(P, dtype=dtype)


def _build_shuffle_call(B, D, Dn, tb, dtype, vmem_limit):
    itemsize = jnp.dtype(dtype).itemsize
    return pl.pallas_call(
        _perm_mm_kernel,
        out_shape=jax.ShapeDtypeStruct((B, Dn), dtype),
        grid_spec=pltpu.PrefetchScalarGridSpec(
            num_scalar_prefetch=0,
            grid=(pl.cdiv(B, tb),),                        # ragged last block masked
            in_specs=[
                pl.BlockSpec((tb, D), lambda i: (i, 0)),   # unpadded x tile (full feature dim)
                pl.BlockSpec((D, Dn), lambda i: (0, 0)),   # resident permutation matrix
            ],
            out_specs=pl.BlockSpec((tb, Dn), lambda i: (i, 0)),  # lane-dense output
        ),
        compiler_params=pltpu.CompilerParams(
            dimension_semantics=("parallel",),             # batch axis -> megacore shard
            vmem_limit_bytes=int(vmem_limit),              # footprint-based, with headroom
        ),
        cost_estimate=pl.CostEstimate(
            flops=2 * B * D * Dn,
            transcendentals=0,
            bytes_accessed=itemsize * (B * D + B * Dn + D * Dn),
        ),
    )


def shuffle_apply(x, perm, perm_matrix=None):
    """Returns x[:, perm] for a static permutation.

    Uses a Pallas TPU kernel (y = x @ P on the MXU) for f32/bf16 and moderate D;
    falls back to XLA's gather otherwise.
    """
    B, D = x.shape
    dtype = x.dtype
    perm = np.asarray(perm)
    budget = _vmem_budget()

    if not _use_pallas_path(D, dtype, budget):
        # TODO(synk): large-D / non-float path uses XLA's gather; a K-tiled
        # Pallas matmul (or sublane-gather kernel) would cover it natively.
        return x[:, perm]

    itemsize = jnp.dtype(dtype).itemsize
    Dn = _padded_cols(D)
    if (perm_matrix is None or perm_matrix.shape != (D, Dn)
            or perm_matrix.dtype != dtype):
        perm_matrix = _build_perm_matrix(perm, D, Dn, dtype)

    tb = _pick_batch_tile(B, D, Dn, itemsize, budget)
    footprint = (2 * tb * D + 2 * tb * Dn + 2 * D * Dn) * itemsize
    vmem_limit = min(budget, footprint + (16 << 20))

    y = _build_shuffle_call(B, D, Dn, tb, dtype, vmem_limit)(x, perm_matrix)
    return y if Dn == D else y[:, :D]   # feature-only slice; batch never padded


# ----------------------------------------------------------------------------
# Module-equivalent layer
# ----------------------------------------------------------------------------
class Shuffle:
    """JAX/Pallas port of the SMAF `Shuffle` flow layer."""

    def __init__(self, num_inputs, key=None):
        if key is None:
            key = jax.random.PRNGKey(0)
        self.num_inputs = num_inputs
        self.perm = np.asarray(jax.random.permutation(key, num_inputs))
        self.inv_perm = np.argsort(self.perm)
        self._P_cache = {}   # (mode, dtype name) -> device-resident 0/1 matrix

    def _cached_perm_matrix(self, mode, dtype):
        dt = jnp.dtype(dtype)
        key = (mode, dt.name)
        if key not in self._P_cache:
            perm = self.perm if mode == "direct" else self.inv_perm
            D = self.num_inputs
            self._P_cache[key] = _build_perm_matrix(perm, D, _padded_cols(D), dt)
        return self._P_cache[key]

    def forward(self, inputs, cond_inputs=None, mode="direct"):
        perm = self.perm if mode == "direct" else self.inv_perm
        P = None
        if _use_pallas_path(self.num_inputs, inputs.dtype, _vmem_budget()):
            P = self._cached_perm_matrix(mode, inputs.dtype)
        outputs = shuffle_apply(inputs, perm, perm_matrix=P)
        # logdet of a permutation is 0; constant, computed in plain JAX.
        logdet = jnp.zeros((inputs.shape[0], 1), dtype=jnp.float32)
        return outputs, logdet

    __call__ = forward


if __name__ == "__main__":
    key = jax.random.PRNGKey(0)
    k_perm, k_x, k_x2 = jax.random.split(key, 3)

    B, D = 8, 32  # batch, num_inputs
    layer = Shuffle(D, key=k_perm)
    x = jax.random.normal(k_x, (B, D), dtype=jnp.float32)

    # direct mode
    y, logdet = layer(x, mode="direct")
    y = jax.block_until_ready(y)
    logdet = jax.block_until_ready(logdet)
    y_ref = x[:, layer.perm]
    assert y.shape == (B, D) and logdet.shape == (B, 1)
    assert jnp.allclose(y, y_ref, atol=1e-6, rtol=1e-6)
    assert bool(jnp.all(logdet == 0))

    # inverse mode round-trips
    x_back, logdet_inv = layer(y, mode="inverse")
    x_back = jax.block_until_ready(x_back)
    assert jnp.allclose(x_back, x, atol=1e-6, rtol=1e-6)
    assert bool(jnp.all(logdet_inv == 0))

    # Ragged batch (tile does not divide B) exercises the masked last block.
    B2 = 20
    x2 = jax.random.normal(k_x2, (B2, D), dtype=jnp.float32)
    y2, _ = layer(x2, mode="direct")
    y2 = jax.block_until_ready(y2)
    assert jnp.allclose(y2, x2[:, layer.perm], atol=1e-6, rtol=1e-6)

    print("KERNEL_OK")
</pallas_src>

<mosaic_0001>
module attributes {stable_mosaic.version = 11 : i64} {
  func.func @_perm_mm_kernel(%arg0: i32, %arg1: memref<8x32xf32, #tpu.memory_space<vmem>>, %arg2: memref<32x128xf32, #tpu.memory_space<vmem>>, %arg3: memref<8x128xf32, #tpu.memory_space<vmem>>) attributes {dimension_semantics = [#tpu.dimension_semantics<parallel>], iteration_bounds = array<i64: 1>, scalar_prefetch = 0 : i64, scratch_operands = 0 : i64, tpu.core_type = #tpu.core_type<tc>, window_params = [{transform_indices = @transform_0, window_bounds = array<i64: 8, 32>}, {pipeline_mode = #tpu.pipeline_mode<synchronous>, transform_indices = @transform_1, window_bounds = array<i64: 32, 128>}, {transform_indices = @transform_2, window_bounds = array<i64: 8, 128>}]} {
    %c0 = arith.constant 0 : index
    %c0_0 = arith.constant 0 : index
    %0 = vector.load %arg1[%c0, %c0_0] : memref<8x32xf32, #tpu.memory_space<vmem>>, vector<8x32xf32>
    %c0_1 = arith.constant 0 : index
    %c0_2 = arith.constant 0 : index
    %1 = vector.load %arg2[%c0_1, %c0_2] : memref<32x128xf32, #tpu.memory_space<vmem>>, vector<32x128xf32>
    %cst = arith.constant dense<0.000000e+00> : vector<8x128xf32>
    %2 = tpu.matmul %0, %1, %cst {dimension_numbers = #tpu.dot_dimension_numbers<[1], [0], [0], [1], [0, 0, 1, 1], [], []>, precision = #tpu.contract_precision<fp32>} : vector<8x32xf32>, vector<32x128xf32>, vector<8x128xf32> -> vector<8x128xf32>
    %c0_3 = arith.constant 0 : index
    %c0_4 = arith.constant 0 : index
    %3 = vector.load %arg3[%c0_3, %c0_4] : memref<8x128xf32, #tpu.memory_space<vmem>>, vector<8x128xf32>
    tpu.vector_store %arg3[%c0_3, %c0_4], %2 {strides = array<i32>} : memref<8x128xf32, #tpu.memory_space<vmem>>, vector<8x128xf32>,
    return
  }
  func.func @transform_0(%arg0: i32) -> (i32, i32) {
    %c0_i32 = arith.constant 0 : i32
    %c0_i32_0 = arith.constant 0 : i32
    return %arg0, %c0_i32 : i32, i32
  }
  func.func @transform_1(%arg0: i32) -> (i32, i32) {
    %c0_i32 = arith.constant 0 : i32
    %c0_i32_0 = arith.constant 0 : i32
    %c0_i32_1 = arith.constant 0 : i32
    return %c0_i32, %c0_i32_0 : i32, i32
  }
  func.func @transform_2(%arg0: i32) -> (i32, i32) {
    %c0_i32 = arith.constant 0 : i32
    %c0_i32_0 = arith.constant 0 : i32
    return %arg0, %c0_i32 : i32, i32
  }
}

</mosaic_0001>

<llo_original>
// kernel: tpu_custom_call.1
$region0: #{tpu_custom_call.1}
  #allocation0 [shape = 'u32[]', space=smem, size = 0x4, offset = 0x4, fixed_abs, tag = 'smem constant byte address 0x4 - core index']
  #allocation1 [shape = 'u32[72,128]{1,0:T(1,128)}', space=vmem, size = 0x9000, scoped, tag = 'internal scratch']
  %s0 = inlined_call_operand.hbm [shape: f32[8,32], index: 0, kind: input, shape index: {}]
  %s1 = inlined_call_operand.hbm [shape: f32[32,128], index: 1, kind: input, shape index: {}]
  %s2 = inlined_call_operand.hbm [shape: f32[8,128], index: 2, kind: output, shape index: {}]
  %s3 = sld [smem:[#allocation0]]
  $region26: #{tpu_custom_call.1} parent=0
    _
  %s5 = ssub.s32 1, %s3
  %s6 = scalar_select 0, %s5, %s3
  $region1: #{tpu_custom_call.1} parent=0
    #allocation2 [shape = 'u8[4096]{0}', space=vmem, size = 0x1000, scoped, tag = 'input window, operand 0, single buffered']
    #allocation3 [shape = 's32[1]{0}', space=sflag, size = 0x4, scoped, tag = 'scoped memory for tpu_custom_call.1']
    #allocation4 [shape = 's32[1]{0}', space=sflag, size = 0x4, scoped, tag = 'scoped memory for tpu_custom_call.1']
    #allocation5 [shape = 'u8[16384]{0}', space=vmem, size = 0x4000, scoped, tag = 'input window, operand 1, single buffered']
    #allocation6 [shape = 's32[1]{0}', space=sflag, size = 0x4, scoped, tag = 'scoped memory for tpu_custom_call.1']
    #allocation7 [shape = 'u8[4096]{0}', space=vmem, size = 0x1000, scoped, tag = 'output window, operand 0, single buffered']
    %7 = vsyncpa [#allocation3], 0
    %8 = vsyncpa [#allocation6], 0
    %9 = vsyncpa [#allocation4], 0
    // Predicated region
    $region2: #{tpu_custom_call.1} parent=1 // pred_check
      _
    $region3: #{tpu_custom_call.1} parent=1 // pred_check_branch
      %11 = sbr.rel (0) target = $region5
    $region4: #{tpu_custom_call.1} parent=1 // pred_region
      %13 = vsyncadd [#allocation3], 0
      %s15 = sshll.u32 %s0, 4
      %s16 = int_to_ptr.hbm [resolvable:$true] %s15
      %s17 = sshll.u32 [#allocation2], 4
      %s18 = int_to_ptr.vmem [resolvable:$true] %s17
      %20 = dma.hbm_to_vmem [thread:$0]  %s16, 128, %s18, [#allocation3]
    $region5: #{tpu_custom_call.1} parent=1 // pred_fallthru
      _
    // Predicated region
    $region6: #{tpu_custom_call.1} parent=1 // pred_check
      _
    $region7: #{tpu_custom_call.1} parent=1 // pred_check_branch
      %22 = sbr.rel (0) target = $region9
    $region8: #{tpu_custom_call.1} parent=1 // pred_region
      %24 = vsyncadd [#allocation6], 0
      %s25 = sshll.u32 %s1, 4
      %s26 = int_to_ptr.hbm [resolvable:$true] %s25
      %s27 = sshll.u32 [#allocation5], 4
      %s28 = int_to_ptr.vmem [resolvable:$true] %s27
      %33 = dma.hbm_to_vmem [thread:$0]  %s26, 512, %s28, [#allocation6], 128, 128, 8
    $region9: #{tpu_custom_call.1} parent=1 // pred_fallthru
      _
    // Predicated region
    $region10: #{tpu_custom_call.1} parent=1 // pred_check
      _
    $region11: #{tpu_custom_call.1} parent=1 // pred_check_branch
      %35 = sbr.rel (0) target = $region13
    $region12: #{tpu_custom_call.1} parent=1 // pred_region
      %37 = dma.done [#allocation3], 128
    $region13: #{tpu_custom_call.1} parent=1 // pred_fallthru
      _
    // Predicated region
    $region14: #{tpu_custom_call.1} parent=1 // pred_check
      _
    $region15: #{tpu_custom_call.1} parent=1 // pred_check_branch
      %39 = sbr.rel (0) target = $region17
    $region16: #{tpu_custom_call.1} parent=1 // pred_region
      %41 = dma.done [#allocation6], 512
    $region17: #{tpu_custom_call.1} parent=1 // pred_fallthru
      _
    %v42 = vld [vmem:[#allocation2] sm:$0xff]
    %v43 = vld [vmem:[#allocation5] sm:$0xff]
    %v44 = vld [vmem:[#allocation5 + $0x8] sm:$0xff]
    %v45 = vld [vmem:[#allocation5 + $0x10] sm:$0xff]
    %v46 = vld [vmem:[#allocation5 + $0x18] sm:$0xff]
    %vm47 = vcmask 261120
    %v49 = vsel %vm47, %v42, 0
    %51 = vmatpush.msra.mxu0 0.0
    %52 = vmatpush.msra.mxu0 0.0
    %53 = vmatpush.msra.mxu0 0.0
    %54 = vmatpush.msra.mxu0 0.0
    %55 = vmatpush.msra.mxu0 0.0
    %56 = vmatpush.msra.mxu0 0.0
    %57 = vmatpush.msra.mxu0 0.0
    %58 = vmatpush.msra.mxu0 0.0
    %59 = vmatpush.msra.mxu0 0.0
    %60 = vmatpush.msra.mxu0 0.0
    %61 = vmatpush.msra.mxu0 0.0
    %62 = vmatpush.msra.mxu0 0.0
    %v63 = vand.u32 %v46, 4294901760
    %64 = vmatpush.msra.mxu0 %v63
    %v65 = vand.u32 %v45, 4294901760
    %66 = vmatpush.msra.mxu0 %v65
    %v67 = vand.u32 %v44, 4294901760
    %68 = vmatpush.msra.mxu0 %v67
    %v69 = vand.u32 %v43, 4294901760
    %70 = vmatpush.msra.mxu0 %v69
    %v71 = vand.u32 %v49, 4294901760
    %v72 = vsub.f32 %v49, %v71
    %v73 = vand.u32 %v72, 4294901760
    %v74 = vsub.f32 %v72, %v73
    %v75 = vand.u32 %v74, 4294901760
    %76 = vmatmul.f32.gmra.mxu0 %v75
    %v77 = vpop.f32.mrf.mxu0
    %v78 = vadd.f32 0.0, %v77
    %79 = vdwg.mxu0
    %80 = vmatpush.msra.mxu0 0.0
    %81 = vmatpush.msra.mxu0 0.0
    %82 = vmatpush.msra.mxu0 0.0
    %83 = vmatpush.msra.mxu0 0.0
    %84 = vmatpush.msra.mxu0 0.0
    %85 = vmatpush.msra.mxu0 0.0
    %86 = vmatpush.msra.mxu0 0.0
    %87 = vmatpush.msra.mxu0 0.0
    %88 = vmatpush.msra.mxu0 0.0
    %89 = vmatpush.msra.mxu0 0.0
    %90 = vmatpush.msra.mxu0 0.0
    %91 = vmatpush.msra.mxu0 0.0
    %v92 = vand.u32 %v46, 4294901760
    %v93 = vsub.f32 %v46, %v92
    %v94 = vand.u32 %v93, 4294901760
    %v95 = vsub.f32 %v93, %v94
    %v96 = vand.u32 %v95, 4294901760
    %97 = vmatpush.msra.mxu0 %v96
    %v98 = vand.u32 %v45, 4294901760
    %v99 = vsub.f32 %v45, %v98
    %v100 = vand.u32 %v99, 4294901760
    %v101 = vsub.f32 %v99, %v100
    %v102 = vand.u32 %v101, 4294901760
    %103 = vmatpush.msra.mxu0 %v102
    %v104 = vand.u32 %v44, 4294901760
    %v105 = vsub.f32 %v44, %v104
    %v106 = vand.u32 %v105, 4294901760
    %v107 = vsub.f32 %v105, %v106
    %v108 = vand.u32 %v107, 4294901760
    %109 = vmatpush.msra.mxu0 %v108
    %v110 = vand.u32 %v43, 4294901760
    %v111 = vsub.f32 %v43, %v110
    %v112 = vand.u32 %v111, 4294901760
    %v113 = vsub.f32 %v111, %v112
    %v114 = vand.u32 %v113, 4294901760
    %115 = vmatpush.msra.mxu0 %v114
    %v116 = vand.u32 %v49, 4294901760
    %117 = vmatmul.f32.gmra.mxu0 %v116
    %v118 = vpop.f32.mrf.mxu0
    %v119 = vadd.f32 %v78, %v118
    %120 = vdwg.mxu0
    %121 = vmatpush.msra.mxu0 0.0
    %122 = vmatpush.msra.mxu0 0.0
    %123 = vmatpush.msra.mxu0 0.0
    %124 = vmatpush.msra.mxu0 0.0
    %125 = vmatpush.msra.mxu0 0.0
    %126 = vmatpush.msra.mxu0 0.0
    %127 = vmatpush.msra.mxu0 0.0
    %128 = vmatpush.msra.mxu0 0.0
    %129 = vmatpush.msra.mxu0 0.0
    %130 = vmatpush.msra.mxu0 0.0
    %131 = vmatpush.msra.mxu0 0.0
    %132 = vmatpush.msra.mxu0 0.0
    %v133 = vand.u32 %v46, 4294901760
    %v134 = vsub.f32 %v46, %v133
    %135 = vmatpush.msra.mxu0 %v134
    %v136 = vand.u32 %v45, 4294901760
    %v137 = vsub.f32 %v45, %v136
    %138 = vmatpush.msra.mxu0 %v137
    %v139 = vand.u32 %v44, 4294901760
    %v140 = vsub.f32 %v44, %v139
    %141 = vmatpush.msra.mxu0 %v140
    %v142 = vand.u32 %v43, 4294901760
    %v143 = vsub.f32 %v43, %v142
    %144 = vmatpush.msra.mxu0 %v143
    %v145 = vand.u32 %v49, 4294901760
    %v146 = vsub.f32 %v49, %v145
    %147 = vmatmul.f32.gmra.mxu0 %v146
    %v148 = vpop.f32.mrf.mxu0
    %v149 = vadd.f32 %v119, %v148
    %150 = vdwg.mxu0
    %151 = vmatpush.msra.mxu0 0.0
    %152 = vmatpush.msra.mxu0 0.0
    %153 = vmatpush.msra.mxu0 0.0
    %154 = vmatpush.msra.mxu0 0.0
    %155 = vmatpush.msra.mxu0 0.0
    %156 = vmatpush.msra.mxu0 0.0
    %157 = vmatpush.msra.mxu0 0.0
    %158 = vmatpush.msra.mxu0 0.0
    %159 = vmatpush.msra.mxu0 0.0
    %160 = vmatpush.msra.mxu0 0.0
    %161 = vmatpush.msra.mxu0 0.0
    %162 = vmatpush.msra.mxu0 0.0
    %v163 = vand.u32 %v46, 4294901760
    %164 = vmatpush.msra.mxu0 %v163
    %v165 = vand.u32 %v45, 4294901760
    %166 = vmatpush.msra.mxu0 %v165
    %v167 = vand.u32 %v44, 4294901760
    %168 = vmatpush.msra.mxu0 %v167
    %v169 = vand.u32 %v43, 4294901760
    %170 = vmatpush.msra.mxu0 %v169
    %v171 = vand.u32 %v49, 4294901760
    %v172 = vsub.f32 %v49, %v171
    %v173 = vand.u32 %v172, 4294901760
    %174 = vmatmul.f32.gmra.mxu0 %v173
    %v175 = vpop.f32.mrf.mxu0
    %v176 = vadd.f32 %v149, %v175
    %177 = vdwg.mxu0
    %178 = vmatpush.msra.mxu0 0.0
    %179 = vmatpush.msra.mxu0 0.0
    %180 = vmatpush.msra.mxu0 0.0
    %181 = vmatpush.msra.mxu0 0.0
    %182 = vmatpush.msra.mxu0 0.0
    %183 = vmatpush.msra.mxu0 0.0
    %184 = vmatpush.msra.mxu0 0.0
    %185 = vmatpush.msra.mxu0 0.0
    %186 = vmatpush.msra.mxu0 0.0
    %187 = vmatpush.msra.mxu0 0.0
    %188 = vmatpush.msra.mxu0 0.0
    %189 = vmatpush.msra.mxu0 0.0
    %v190 = vand.u32 %v46, 4294901760
    %v191 = vsub.f32 %v46, %v190
    %v192 = vand.u32 %v191, 4294901760
    %193 = vmatpush.msra.mxu0 %v192
    %v194 = vand.u32 %v45, 4294901760
    %v195 = vsub.f32 %v45, %v194
    %v196 = vand.u32 %v195, 4294901760
    %197 = vmatpush.msra.mxu0 %v196
    %v198 = vand.u32 %v44, 4294901760
    %v199 = vsub.f32 %v44, %v198
    %v200 = vand.u32 %v199, 4294901760
    %201 = vmatpush.msra.mxu0 %v200
    %v202 = vand.u32 %v43, 4294901760
    %v203 = vsub.f32 %v43, %v202
    %v204 = vand.u32 %v203, 4294901760
    %205 = vmatpush.msra.mxu0 %v204
    %v206 = vand.u32 %v49, 4294901760
    %207 = vmatmul.f32.gmra.mxu0 %v206
    %v208 = vpop.f32.mrf.mxu0
    %v209 = vadd.f32 %v176, %v208
    %210 = vdwg.mxu0
    %211 = vmatpush.msra.mxu0 0.0
    %212 = vmatpush.msra.mxu0 0.0
    %213 = vmatpush.msra.mxu0 0.0
    %214 = vmatpush.msra.mxu0 0.0
    %215 = vmatpush.msra.mxu0 0.0
    %216 = vmatpush.msra.mxu0 0.0
    %217 = vmatpush.msra.mxu0 0.0
    %218 = vmatpush.msra.mxu0 0.0
    %219 = vmatpush.msra.mxu0 0.0
    %220 = vmatpush.msra.mxu0 0.0
    %221 = vmatpush.msra.mxu0 0.0
    %222 = vmatpush.msra.mxu0 0.0
    %v223 = vand.u32 %v46, 4294901760
    %224 = vmatpush.msra.mxu0 %v223
    %v225 = vand.u32 %v45, 4294901760
    %226 = vmatpush.msra.mxu0 %v225
    %v227 = vand.u32 %v44, 4294901760
    %228 = vmatpush.msra.mxu0 %v227
    %v229 = vand.u32 %v43, 4294901760
    %230 = vmatpush.msra.mxu0 %v229
    %v231 = vand.u32 %v49, 4294901760
    %232 = vmatmul.f32.gmra.mxu0 %v231
    %v233 = vpop.f32.mrf.mxu0
    %v234 = vadd.f32 %v209, %v233
    %235 = vdwg.mxu0
    %236 = vst [vmem:[#allocation7] sm:$0xff] %v234
    // Predicated region
    $region18: #{tpu_custom_call.1} parent=1 // pred_check
      _
    $region19: #{tpu_custom_call.1} parent=1 // pred_check_branch
      %238 = sbr.rel (0) target = $region21
    $region20: #{tpu_custom_call.1} parent=1 // pred_region
      %240 = vsyncadd [#allocation4], 0
      %s242 = sshll.u32 [#allocation7], 4
      %s243 = int_to_ptr.vmem [resolvable:$true] %s242
      %s244 = sshll.u32 %s2, 4
      %s245 = int_to_ptr.hbm [resolvable:$true] %s244
      %247 = dma.vmem_to_hbm [thread:$0]  %s243, 128, %s245, [#allocation4]
    $region21: #{tpu_custom_call.1} parent=1 // pred_fallthru
      _
    // Predicated region
    $region22: #{tpu_custom_call.1} parent=1 // pred_check
      _
    $region23: #{tpu_custom_call.1} parent=1 // pred_check_branch
      %249 = sbr.rel (0) target = $region25
    $region24: #{tpu_custom_call.1} parent=1 // pred_region
      %251 = dma.done [#allocation4], 128
    $region25: #{tpu_custom_call.1} parent=1 // pred_fallthru
      _
    %252 = vsyncpa [#allocation3], 1
    %253 = vsyncpa [#allocation6], 1
    %254 = vsyncpa [#allocation4], 1

</llo_original>
